<compile_context>
chip_gen: v6e
topology: v6e:2x2x1
jax: 0.10.0
libtpu: 0.0.40
codegen_flags: <defaults>
</compile_context>

<pallas_src>
import numpy as np
import jax
import jax.numpy as jnp
from jax.experimental import pallas as pl
from jax.experimental.pallas import tpu as pltpu

EPS = float(np.finfo(np.float32).eps)
CLAMP_MAX = 88.722835

BATCH = 2
CHANNELS = 4
HEIGHT = 16
WIDTH = 16
KERNEL_SIZE = 3   # must be odd


# ------------------------------ fused kernel ----------------------------------
def make_dpool_kernel(H, W, ksize):
    r = ksize // 2
    HW = H * W
    pad = r * W + r          # flat padding covering every (dy, dx) tap offset

    def kernel(x_ref, sigma_ref, o_ref, epad_ref):
        # x_ref:     (B*C, H*W)          flattened NCHW activations (lane dense)
        # sigma_ref: (B*C, 1)            per-channel sigma (replicated over batch)
        # o_ref:     (B*C, H*W)          pooled output (lane dense)
        # epad_ref:  (B*C, H*W + 2*pad)  VMEM scratch: zero-padded exp(x)
        bc = x_ref.shape[0]

        # exp(clamp(x)) for all channels at once, zero-padded inside VMEM
        e = jnp.exp(jnp.minimum(x_ref[...], CLAMP_MAX))
        epad_ref[...] = jnp.zeros(epad_ref.shape, jnp.float32)
        epad_ref[:, pad:pad + HW] = e

        # per-channel normalized Gaussian tap weights, vectorized over B*C
        s2 = sigma_ref[...] * sigma_ref[...] + EPS              # (B*C, 1)
        wts = []
        wsum = None
        for dy in range(-r, r + 1):
            for dx in range(-r, r + 1):
                w = jnp.exp(-(float(dy * dy + dx * dx) / 2.0) / s2)
                wts.append(w)
                wsum = w if wsum is None else wsum + w
        inv_wsum = 1.0 / wsum                                   # (B*C, 1)

        # column index of every flattened pixel (hoisted out of the tap loop)
        col = jax.lax.broadcasted_iota(jnp.int32, (bc, HW), 1) % W

        # depthwise conv: K*K shifted windows, each applied to all channels
        acc = jnp.zeros((bc, HW), jnp.float32)
        t = 0
        for dy in range(-r, r + 1):
            for dx in range(-r, r + 1):
                s = dy * W + dx
                win = epad_ref[:, pad + s:pad + s + HW]         # (B*C, H*W)
                # flat shift wraps across rows -> mask horizontally-OOB columns
                if dx < 0:
                    win = jnp.where(col >= -dx, win, 0.0)
                elif dx > 0:
                    win = jnp.where(col < W - dx, win, 0.0)
                acc = acc + (wts[t] * inv_wsum) * win
                t += 1

        o_ref[...] = jnp.log(acc + EPS)

    return kernel


def dynamic_pooling(x, sigma, ksize=KERNEL_SIZE):
    """x: (B, C, H, W) f32, sigma: (C,) f32 -> (B, C, H, W) f32."""
    B, C, H, W = x.shape
    r = ksize // 2
    BC, HW = B * C, H * W
    pad = r * W + r

    x2 = x.reshape(BC, HW)                                      # row-major view
    sigma_bc = jnp.broadcast_to(sigma[None, :].astype(jnp.float32),
                                (B, C)).reshape(BC, 1)

    out2 = pl.pallas_call(
        make_dpool_kernel(H, W, ksize),
        grid=(1,),
        in_specs=[pl.BlockSpec((BC, HW), lambda i: (0, 0)),
                  pl.BlockSpec((BC, 1), lambda i: (0, 0))],
        out_specs=pl.BlockSpec((BC, HW), lambda i: (0, 0)),
        out_shape=jax.ShapeDtypeStruct((BC, HW), jnp.float32),
        scratch_shapes=[pltpu.VMEM((BC, HW + 2 * pad), jnp.float32)],
    )(x2, sigma_bc)
    return out2.reshape(B, C, H, W)


# --------------------------- plain-JAX reference -------------------------------
def dynamic_pooling_ref(x, sigma, ksize=KERNEL_SIZE):
    B, C, H, W = x.shape
    r = ksize // 2
    coords = jnp.arange(-r, r + 1, dtype=jnp.float32)
    dissq = coords[None, :] ** 2 + coords[:, None] ** 2
    kern = jnp.exp(-(dissq / 2.0)[None] / (sigma[:, None, None] ** 2 + EPS))
    kern = kern / jnp.sum(kern, axis=(1, 2), keepdims=True)
    kern = kern.reshape(C, 1, ksize, ksize)
    expx = jnp.exp(jnp.minimum(x, CLAMP_MAX))
    conv = jax.lax.conv_general_dilated(
        expx, kern, window_strides=(1, 1), padding=((r, r), (r, r)),
        dimension_numbers=('NCHW', 'OIHW', 'NCHW'), feature_group_count=C)
    return jnp.log(conv + EPS)


if __name__ == "__main__":
    key = jax.random.PRNGKey(0)
    kx, ks = jax.random.split(key)
    x = jax.random.normal(kx, (BATCH, CHANNELS, HEIGHT, WIDTH), jnp.float32)
    # sigma initialized as in the module (kernel_size/2/2) plus a small
    # deterministic per-channel perturbation so every channel has its own kernel
    sigma = (KERNEL_SIZE / 2.0 / 2.0
             + 0.25 * jax.random.uniform(ks, (CHANNELS,), jnp.float32))

    out = dynamic_pooling(x, sigma, KERNEL_SIZE)
    jax.block_until_ready(out)

    assert out.shape == (BATCH, CHANNELS, HEIGHT, WIDTH)
    assert bool(jnp.all(jnp.isfinite(out)))

    ref = dynamic_pooling_ref(x, sigma, KERNEL_SIZE)
    assert bool(jnp.allclose(out, ref, rtol=2e-5, atol=2e-5)), \
        float(jnp.max(jnp.abs(out - ref)))

    print("KERNEL_OK")
</pallas_src>

<mosaic_0001>
module attributes {stable_mosaic.version = 11 : i64} {
  func.func @kernel(%arg0: i32, %arg1: memref<8x256xf32, #tpu.memory_space<vmem>>, %arg2: memref<8x1xf32, #tpu.memory_space<vmem>>, %arg3: memref<8x256xf32, #tpu.memory_space<vmem>>, %arg4: memref<8x290xf32, #tpu.memory_space<vmem>>) attributes {dimension_semantics = [#tpu.dimension_semantics<arbitrary>], iteration_bounds = array<i64: 1>, scalar_prefetch = 0 : i64, scratch_operands = 1 : i64, tpu.core_type = #tpu.core_type<tc>, window_params = [{pipeline_mode = #tpu.pipeline_mode<synchronous>, transform_indices = @transform_0, window_bounds = array<i64: 8, 256>}, {pipeline_mode = #tpu.pipeline_mode<synchronous>, transform_indices = @transform_1, window_bounds = array<i64: 8, 1>}, {pipeline_mode = #tpu.pipeline_mode<synchronous>, transform_indices = @transform_2, window_bounds = array<i64: 8, 256>}]} {
    %c0 = arith.constant 0 : index
    %c0_0 = arith.constant 0 : index
    %0 = vector.load %arg1[%c0, %c0_0] : memref<8x256xf32, #tpu.memory_space<vmem>>, vector<8x256xf32>
    %cst = arith.constant 88.7228317 : f32
    %1 = vector.broadcast %cst : f32 to vector<8x256xf32>
    %2 = arith.minimumf %0, %1 : vector<8x256xf32>
    %3 = math.exp %2 : vector<8x256xf32>
    %cst_1 = arith.constant 0.000000e+00 : f32
    %4 = vector.broadcast %cst_1 : f32 to vector<8x290xf32>
    %c0_2 = arith.constant 0 : index
    %c0_3 = arith.constant 0 : index
    %5 = vector.load %arg4[%c0_2, %c0_3] : memref<8x290xf32, #tpu.memory_space<vmem>>, vector<8x290xf32>
    tpu.vector_store %arg4[%c0_2, %c0_3], %4 {strides = array<i32>} : memref<8x290xf32, #tpu.memory_space<vmem>>, vector<8x290xf32>,
    %c0_4 = arith.constant 0 : index
    %c17 = arith.constant 17 : index
    %6 = vector.load %arg4[%c0_4, %c17] : memref<8x290xf32, #tpu.memory_space<vmem>>, vector<8x256xf32>
    tpu.vector_store %arg4[%c0_4, %c17], %3 {strides = array<i32>} : memref<8x290xf32, #tpu.memory_space<vmem>>, vector<8x256xf32>,
    %c0_5 = arith.constant 0 : index
    %c0_6 = arith.constant 0 : index
    %7 = vector.load %arg2[%c0_5, %c0_6] : memref<8x1xf32, #tpu.memory_space<vmem>>, vector<8x1xf32>
    %c0_7 = arith.constant 0 : index
    %c0_8 = arith.constant 0 : index
    %8 = vector.load %arg2[%c0_7, %c0_8] : memref<8x1xf32, #tpu.memory_space<vmem>>, vector<8x1xf32>
    %9 = arith.mulf %7, %8 : vector<8x1xf32>
    %cst_9 = arith.constant 1.1920929E-7 : f32
    %10 = vector.broadcast %cst_9 : f32 to vector<8x1xf32>
    %11 = arith.addf %9, %10 : vector<8x1xf32>
    %cst_10 = arith.constant -1.000000e+00 : f32
    %12 = vector.broadcast %cst_10 : f32 to vector<8x1xf32>
    %13 = arith.divf %12, %11 : vector<8x1xf32>
    %14 = math.exp %13 : vector<8x1xf32>
    %cst_11 = arith.constant -5.000000e-01 : f32
    %15 = vector.broadcast %cst_11 : f32 to vector<8x1xf32>
    %16 = arith.divf %15, %11 : vector<8x1xf32>
    %17 = math.exp %16 : vector<8x1xf32>
    %18 = arith.addf %14, %17 : vector<8x1xf32>
    %cst_12 = arith.constant -1.000000e+00 : f32
    %19 = vector.broadcast %cst_12 : f32 to vector<8x1xf32>
    %20 = arith.divf %19, %11 : vector<8x1xf32>
    %21 = math.exp %20 : vector<8x1xf32>
    %22 = arith.addf %18, %21 : vector<8x1xf32>
    %cst_13 = arith.constant -5.000000e-01 : f32
    %23 = vector.broadcast %cst_13 : f32 to vector<8x1xf32>
    %24 = arith.divf %23, %11 : vector<8x1xf32>
    %25 = math.exp %24 : vector<8x1xf32>
    %26 = arith.addf %22, %25 : vector<8x1xf32>
    %cst_14 = arith.constant -0.000000e+00 : f32
    %27 = vector.broadcast %cst_14 : f32 to vector<8x1xf32>
    %28 = arith.divf %27, %11 : vector<8x1xf32>
    %29 = math.exp %28 : vector<8x1xf32>
    %30 = arith.addf %26, %29 : vector<8x1xf32>
    %cst_15 = arith.constant -5.000000e-01 : f32
    %31 = vector.broadcast %cst_15 : f32 to vector<8x1xf32>
    %32 = arith.divf %31, %11 : vector<8x1xf32>
    %33 = math.exp %32 : vector<8x1xf32>
    %34 = arith.addf %30, %33 : vector<8x1xf32>
    %cst_16 = arith.constant -1.000000e+00 : f32
    %35 = vector.broadcast %cst_16 : f32 to vector<8x1xf32>
    %36 = arith.divf %35, %11 : vector<8x1xf32>
    %37 = math.exp %36 : vector<8x1xf32>
    %38 = arith.addf %34, %37 : vector<8x1xf32>
    %cst_17 = arith.constant -5.000000e-01 : f32
    %39 = vector.broadcast %cst_17 : f32 to vector<8x1xf32>
    %40 = arith.divf %39, %11 : vector<8x1xf32>
    %41 = math.exp %40 : vector<8x1xf32>
    %42 = arith.addf %38, %41 : vector<8x1xf32>
    %cst_18 = arith.constant -1.000000e+00 : f32
    %43 = vector.broadcast %cst_18 : f32 to vector<8x1xf32>
    %44 = arith.divf %43, %11 : vector<8x1xf32>
    %45 = math.exp %44 : vector<8x1xf32>
    %46 = arith.addf %42, %45 : vector<8x1xf32>
    %cst_19 = arith.constant 1.000000e+00 : f32
    %47 = vector.broadcast %cst_19 : f32 to vector<8x1xf32>
    %48 = arith.divf %47, %46 : vector<8x1xf32>
    %49 = tpu.iota {dimensions = array<i32: 1>} : vector<8x256xi32>
    %c16_i32 = arith.constant 16 : i32
    %c0_i32 = arith.constant 0 : i32
    %50 = arith.cmpi eq, %c16_i32, %c0_i32 : i32
    %c1_i32 = arith.constant 1 : i32
    %51 = arith.select %50, %c1_i32, %c16_i32 : i32
    %52 = vector.broadcast %51 : i32 to vector<8x256xi32>
    %53 = arith.remsi %49, %52 : vector<8x256xi32>
    %c0_i32_20 = arith.constant 0 : i32
    %54 = vector.broadcast %c0_i32_20 : i32 to vector<8x256xi32>
    %55 = arith.cmpi ne, %53, %54 : vector<8x256xi32>
    %c0_i32_21 = arith.constant 0 : i32
    %56 = vector.broadcast %c0_i32_21 : i32 to vector<8x256xi32>
    %57 = arith.cmpi slt, %53, %56 : vector<8x256xi32>
    %c0_i32_22 = arith.constant 0 : i32
    %58 = arith.cmpi slt, %51, %c0_i32_22 : i32
    %59 = vector.broadcast %58 : i1 to vector<8x256xi1>
    %60 = vector.broadcast %59 : vector<8x256xi1> to vector<8x256xi1>
    %61 = arith.xori %57, %60 : vector<8x256xi1>
    %62 = arith.andi %61, %55 : vector<8x256xi1>
    %63 = vector.broadcast %51 : i32 to vector<8x256xi32>
    %64 = arith.addi %53, %63 : vector<8x256xi32>
    %65 = arith.select %62, %64, %53 : vector<8x256xi1>, vector<8x256xi32>
    %cst_23 = arith.constant 0.000000e+00 : f32
    %66 = vector.broadcast %cst_23 : f32 to vector<8x256xf32>
    %c0_24 = arith.constant 0 : index
    %c0_25 = arith.constant 0 : index
    %67 = vector.load %arg4[%c0_24, %c0_25] : memref<8x290xf32, #tpu.memory_space<vmem>>, vector<8x256xf32>
    %c1_i32_26 = arith.constant 1 : i32
    %68 = vector.broadcast %c1_i32_26 : i32 to vector<8x256xi32>
    %69 = arith.cmpi sge, %65, %68 : vector<8x256xi32>
    %cst_27 = arith.constant 0.000000e+00 : f32
    %70 = vector.broadcast %cst_27 : f32 to vector<8x256xf32>
    %71 = arith.select %69, %67, %70 : vector<8x256xi1>, vector<8x256xf32>
    %72 = arith.mulf %14, %48 : vector<8x1xf32>
    %73 = vector.broadcast %72 : vector<8x1xf32> to vector<8x256xf32>
    %74 = arith.mulf %73, %71 : vector<8x256xf32>
    %75 = arith.addf %66, %74 : vector<8x256xf32>
    %c0_28 = arith.constant 0 : index
    %c1 = arith.constant 1 : index
    %76 = vector.load %arg4[%c0_28, %c1] : memref<8x290xf32, #tpu.memory_space<vmem>>, vector<8x256xf32>
    %77 = arith.mulf %17, %48 : vector<8x1xf32>
    %78 = vector.broadcast %77 : vector<8x1xf32> to vector<8x256xf32>
    %79 = arith.mulf %78, %76 : vector<8x256xf32>
    %80 = arith.addf %75, %79 : vector<8x256xf32>
    %c0_29 = arith.constant 0 : index
    %c2 = arith.constant 2 : index
    %81 = vector.load %arg4[%c0_29, %c2] : memref<8x290xf32, #tpu.memory_space<vmem>>, vector<8x256xf32>
    %c15_i32 = arith.constant 15 : i32
    %82 = vector.broadcast %c15_i32 : i32 to vector<8x256xi32>
    %83 = arith.cmpi slt, %65, %82 : vector<8x256xi32>
    %cst_30 = arith.constant 0.000000e+00 : f32
    %84 = vector.broadcast %cst_30 : f32 to vector<8x256xf32>
    %85 = arith.select %83, %81, %84 : vector<8x256xi1>, vector<8x256xf32>
    %86 = arith.mulf %21, %48 : vector<8x1xf32>
    %87 = vector.broadcast %86 : vector<8x1xf32> to vector<8x256xf32>
    %88 = arith.mulf %87, %85 : vector<8x256xf32>
    %89 = arith.addf %80, %88 : vector<8x256xf32>
    %c0_31 = arith.constant 0 : index
    %c16 = arith.constant 16 : index
    %90 = vector.load %arg4[%c0_31, %c16] : memref<8x290xf32, #tpu.memory_space<vmem>>, vector<8x256xf32>
    %c1_i32_32 = arith.constant 1 : i32
    %91 = vector.broadcast %c1_i32_32 : i32 to vector<8x256xi32>
    %92 = arith.cmpi sge, %65, %91 : vector<8x256xi32>
    %cst_33 = arith.constant 0.000000e+00 : f32
    %93 = vector.broadcast %cst_33 : f32 to vector<8x256xf32>
    %94 = arith.select %92, %90, %93 : vector<8x256xi1>, vector<8x256xf32>
    %95 = arith.mulf %25, %48 : vector<8x1xf32>
    %96 = vector.broadcast %95 : vector<8x1xf32> to vector<8x256xf32>
    %97 = arith.mulf %96, %94 : vector<8x256xf32>
    %98 = arith.addf %89, %97 : vector<8x256xf32>
    %c0_34 = arith.constant 0 : index
    %c17_35 = arith.constant 17 : index
    %99 = vector.load %arg4[%c0_34, %c17_35] : memref<8x290xf32, #tpu.memory_space<vmem>>, vector<8x256xf32>
    %100 = arith.mulf %29, %48 : vector<8x1xf32>
    %101 = vector.broadcast %100 : vector<8x1xf32> to vector<8x256xf32>
    %102 = arith.mulf %101, %99 : vector<8x256xf32>
    %103 = arith.addf %98, %102 : vector<8x256xf32>
    %c0_36 = arith.constant 0 : index
    %c18 = arith.constant 18 : index
    %104 = vector.load %arg4[%c0_36, %c18] : memref<8x290xf32, #tpu.memory_space<vmem>>, vector<8x256xf32>
    %c15_i32_37 = arith.constant 15 : i32
    %105 = vector.broadcast %c15_i32_37 : i32 to vector<8x256xi32>
    %106 = arith.cmpi slt, %65, %105 : vector<8x256xi32>
    %cst_38 = arith.constant 0.000000e+00 : f32
    %107 = vector.broadcast %cst_38 : f32 to vector<8x256xf32>
    %108 = arith.select %106, %104, %107 : vector<8x256xi1>, vector<8x256xf32>
    %109 = arith.mulf %33, %48 : vector<8x1xf32>
    %110 = vector.broadcast %109 : vector<8x1xf32> to vector<8x256xf32>
    %111 = arith.mulf %110, %108 : vector<8x256xf32>
    %112 = arith.addf %103, %111 : vector<8x256xf32>
    %c0_39 = arith.constant 0 : index
    %c32 = arith.constant 32 : index
    %113 = vector.load %arg4[%c0_39, %c32] : memref<8x290xf32, #tpu.memory_space<vmem>>, vector<8x256xf32>
    %c1_i32_40 = arith.constant 1 : i32
    %114 = vector.broadcast %c1_i32_40 : i32 to vector<8x256xi32>
    %115 = arith.cmpi sge, %65, %114 : vector<8x256xi32>
    %cst_41 = arith.constant 0.000000e+00 : f32
    %116 = vector.broadcast %cst_41 : f32 to vector<8x256xf32>
    %117 = arith.select %115, %113, %116 : vector<8x256xi1>, vector<8x256xf32>
    %118 = arith.mulf %37, %48 : vector<8x1xf32>
    %119 = vector.broadcast %118 : vector<8x1xf32> to vector<8x256xf32>
    %120 = arith.mulf %119, %117 : vector<8x256xf32>
    %121 = arith.addf %112, %120 : vector<8x256xf32>
    %c0_42 = arith.constant 0 : index
    %c33 = arith.constant 33 : index
    %122 = vector.load %arg4[%c0_42, %c33] : memref<8x290xf32, #tpu.memory_space<vmem>>, vector<8x256xf32>
    %123 = arith.mulf %41, %48 : vector<8x1xf32>
    %124 = vector.broadcast %123 : vector<8x1xf32> to vector<8x256xf32>
    %125 = arith.mulf %124, %122 : vector<8x256xf32>
    %126 = arith.addf %121, %125 : vector<8x256xf32>
    %c0_43 = arith.constant 0 : index
    %c34 = arith.constant 34 : index
    %127 = vector.load %arg4[%c0_43, %c34] : memref<8x290xf32, #tpu.memory_space<vmem>>, vector<8x256xf32>
    %c15_i32_44 = arith.constant 15 : i32
    %128 = vector.broadcast %c15_i32_44 : i32 to vector<8x256xi32>
    %129 = arith.cmpi slt, %65, %128 : vector<8x256xi32>
    %cst_45 = arith.constant 0.000000e+00 : f32
    %130 = vector.broadcast %cst_45 : f32 to vector<8x256xf32>
    %131 = arith.select %129, %127, %130 : vector<8x256xi1>, vector<8x256xf32>
    %132 = arith.mulf %45, %48 : vector<8x1xf32>
    %133 = vector.broadcast %132 : vector<8x1xf32> to vector<8x256xf32>
    %134 = arith.mulf %133, %131 : vector<8x256xf32>
    %135 = arith.addf %126, %134 : vector<8x256xf32>
    %cst_46 = arith.constant 1.1920929E-7 : f32
    %136 = vector.broadcast %cst_46 : f32 to vector<8x256xf32>
    %137 = arith.addf %135, %136 : vector<8x256xf32>
    %138 = math.log %137 : vector<8x256xf32>
    %c0_47 = arith.constant 0 : index
    %c0_48 = arith.constant 0 : index
    %139 = vector.load %arg3[%c0_47, %c0_48] : memref<8x256xf32, #tpu.memory_space<vmem>>, vector<8x256xf32>
    tpu.vector_store %arg3[%c0_47, %c0_48], %138 {strides = array<i32>} : memref<8x256xf32, #tpu.memory_space<vmem>>, vector<8x256xf32>,
    return
  }
  func.func @transform_0(%arg0: i32) -> (i32, i32) {
    %c0_i32 = arith.constant 0 : i32
    %c0_i32_0 = arith.constant 0 : i32
    %c0_i32_1 = arith.constant 0 : i32
    return %c0_i32, %c0_i32_0 : i32, i32
  }
  func.func @transform_1(%arg0: i32) -> (i32, i32) {
    %c0_i32 = arith.constant 0 : i32
    %c0_i32_0 = arith.constant 0 : i32
    %c0_i32_1 = arith.constant 0 : i32
    return %c0_i32, %c0_i32_0 : i32, i32
  }
  func.func @transform_2(%arg0: i32) -> (i32, i32) {
    %c0_i32 = arith.constant 0 : i32
    %c0_i32_0 = arith.constant 0 : i32
    %c0_i32_1 = arith.constant 0 : i32
    return %c0_i32, %c0_i32_0 : i32, i32
  }
}

</mosaic_0001>

<llo_original>
// kernel: tpu_custom_call.1
$region0: #{tpu_custom_call.1}
  #allocation0 [shape = 'u32[]', space=smem, size = 0x4, offset = 0x4, fixed_abs, tag = 'smem constant byte address 0x4 - core index']
  #allocation1 [shape = 'u32[144,128]{1,0:T(1,128)}', space=vmem, size = 0x12000, scoped, tag = 'internal scratch']
  #allocation2 [shape = 'f32[8,290]{1,0:T(8,128)}', space=vmem, size = 0x3000, scoped, tag = 'scratch operand']
  %s0 = inlined_call_operand.hbm [shape: f32[8,256], index: 0, kind: input, shape index: {}]
  %s1 = inlined_call_operand.vmem [shape: f32[8,1], index: 1, kind: input, shape index: {}]
  %s2 = inlined_call_operand.hbm [shape: f32[8,256], index: 2, kind: output, shape index: {}]
  %s3 = sld [smem:[#allocation0]]
  $region22: #{tpu_custom_call.1} parent=0
    _
  %s5 = ssub.s32 1, %s3
  %s6 = scalar_select 0, %s5, %s3
  $region1: #{tpu_custom_call.1} parent=0
    #allocation3 [shape = 'u8[8192]{0}', space=vmem, size = 0x2000, scoped, tag = 'input window, operand 0, single buffered']
    #allocation4 [shape = 's32[1]{0}', space=sflag, size = 0x4, scoped, tag = 'scoped memory for tpu_custom_call.1']
    #allocation5 [shape = 's32[1]{0}', space=sflag, size = 0x4, scoped, tag = 'scoped memory for tpu_custom_call.1']
    #allocation6 [shape = 'u8[8192]{0}', space=vmem, size = 0x2000, scoped, tag = 'output window, operand 0, single buffered']
    %7 = vsyncpa [#allocation4], 0
    %8 = vsyncpa [#allocation5], 0
    // Predicated region
    $region2: #{tpu_custom_call.1} parent=1 // pred_check
      _
    $region3: #{tpu_custom_call.1} parent=1 // pred_check_branch
      %10 = sbr.rel (0) target = $region5
    $region4: #{tpu_custom_call.1} parent=1 // pred_region
      %s12 = ssub.s32 256, 256
      %13 = vsyncadd [#allocation4], %s12
      %s15 = sshll.u32 [#allocation3], 4
      %s16 = int_to_ptr.vmem [resolvable:$true] %s15
      %18 = dma.hbm_to_vmem [thread:$0]  %s0, 256, %s16, [#allocation4]
    $region5: #{tpu_custom_call.1} parent=1 // pred_fallthru
      _
    // Predicated region
    $region6: #{tpu_custom_call.1} parent=1 // pred_check
      _
    $region7: #{tpu_custom_call.1} parent=1 // pred_check_branch
      %20 = sbr.rel (0) target = $region9
    $region8: #{tpu_custom_call.1} parent=1 // pred_region
      _
    $region9: #{tpu_custom_call.1} parent=1 // pred_fallthru
      _
    // Predicated region
    $region10: #{tpu_custom_call.1} parent=1 // pred_check
      _
    $region11: #{tpu_custom_call.1} parent=1 // pred_check_branch
      %22 = sbr.rel (0) target = $region13
    $region12: #{tpu_custom_call.1} parent=1 // pred_region
      %23 = dma.done [#allocation4], 256
    $region13: #{tpu_custom_call.1} parent=1 // pred_fallthru
      _
    %v24 = vld [vmem:[#allocation3] sm:$0xff]
    %v25 = vld [vmem:[#allocation3 + $0x8] sm:$0xff]
    %v26 = vmin.f32 %v24, 88.72283
    %v27 = vmin.f32 %v25, 88.72283
    %v28 = vmul.f32 %v26, 1.442695
    %v29 = vpow.pop %v28
    %v30 = vmul.f32 %v27, 1.442695
    %v31 = vpow.pop %v30
    %32 = vst [vmem:[#allocation2] sm:$0xff] 0.0
    %33 = vst [vmem:[#allocation2 + $0x8] sm:$0xff] 0.0
    %vm34 = vcmask 277504
    %35 = vst.msk [vmem:[#allocation2 + $0x10] sm:$0xff] %vm34, 0.0
    %38 = vrot.lane.b32.xlu0 %v29, 17
    %v39 = vpop.permute.xlu0 %38
    %40 = vrot.lane.b32.xlu0 %v31, 17
    %v41 = vpop.permute.xlu0 %40
    %vm42 = vcmask 138240
    %v43 = vsel %vm42, %v39, %v41
    %vm47 = vcmask 1047688
    %48 = vst.msk [vmem:[#allocation2] sm:$0xff] %vm47, %v39
    %49 = vst [vmem:[#allocation2 + $0x8] sm:$0xff] %v43
    %50 = vst.msk [vmem:[#allocation2 + $0x10] sm:$0xff] %vm42, %v41
    %v51 = vld [vmem:[%s1] sm:$0xff]
    %v52 = vmul.f32 %v51, %v51
    %v53 = vadd.f32 %v52, 1.1920929e-07
    %v54 = vrcp.pop %v53
    %v55 = vmul.f32 -1.0, %v54
    %v56 = vmul.f32 %v55, 1.442695
    %v57 = vpow.pop %v56
    %v58 = vmul.f32 -0.5, %v54
    %v59 = vmul.f32 %v58, 1.442695
    %v60 = vpow.pop %v59
    %v61 = vadd.f32 %v57, %v60
    %v62 = vadd.f32 %v61, %v57
    %v63 = vadd.f32 %v62, %v60
    %v64 = vmul.f32 -0.0, %v54
    %v65 = vmul.f32 %v64, 1.442695
    %v66 = vpow.pop %v65
    %v67 = vadd.f32 %v63, %v66
    %v68 = vadd.f32 %v67, %v60
    %v69 = vadd.f32 %v68, %v57
    %v70 = vadd.f32 %v69, %v60
    %v71 = vadd.f32 %v70, %v57
    %v72 = vrcp.pop %v71
    %v73 = vmul.f32 1.0, %v72
    %v74 = vlaneseq
    %v75 = vand.u32 %v74, 127
    %v76 = vadd.s32 %v75, 128
    %vm77 = vcmp.lt.s32.totalorder %v75, 0
    %v78 = vsub.s32 0, %v75
    %v79 = vsel %vm77, %v78, %v75
    %v80 = vshrl.u32 %v79, 4
    %v81 = vand.u32 %v79, 15
    %v82 = vsub.s32 0, %v81
    %v83 = vsel %vm77, %v82, %v81
    %vm84 = vcmp.lt.s32.totalorder %v76, 0
    %v85 = vsub.s32 0, %v76
    %v86 = vsel %vm84, %v85, %v76
    %v87 = vshrl.u32 %v86, 4
    %v88 = vand.u32 %v86, 15
    %v89 = vsub.s32 0, %v88
    %v90 = vsel %vm84, %v89, %v88
    %vm91 = vcmp.ne.s32.totalorder %v83, 0
    %vm92 = vcmp.ne.s32.totalorder %v90, 0
    %vm93 = vcmp.lt.s32.totalorder %v83, 0
    %vm94 = vcmp.lt.s32.totalorder %v90, 0
    %vm95 = vmand %vm93, %vm91
    %vm96 = vmand %vm94, %vm92
    %v97 = vadd.s32 %v83, 16
    %v98 = vadd.s32 %v90, 16
    %v99 = vsel %vm95, %v97, %v83
    %v100 = vsel %vm96, %v98, %v90
    %v101 = vld [vmem:[#allocation2] sm:$0xff]
    %v102 = vld [vmem:[#allocation2 + $0x8] sm:$0xff]
    %vm103 = vcmp.ge.s32.totalorder %v99, 1
    %vm104 = vcmp.ge.s32.totalorder %v100, 1
    %v105 = vsel %vm103, %v101, 0.0
    %v106 = vsel %vm104, %v102, 0.0
    %v107 = vmul.f32 %v57, %v73
    %109 = vset.pattern.permute.xlu0 0
    %110 = vperm.xlu0 %109, %v107
    %v111 = vpop.permute.xlu0 %110
    %v113 = vmul.f32 %v111, %v105
    %v114 = vmul.f32 %v111, %v106
    %v115 = vadd.f32 %v113, 0.0
    %v116 = vadd.f32 %v114, 0.0
    %v117 = vld [vmem:[#allocation2] sm:$0xff]
    %v118 = vld [vmem:[#allocation2 + $0x8] sm:$0xff]
    %v119 = vld [vmem:[#allocation2 + $0x10] sm:$0xff]
    %v120 = vmul.f32 %v60, %v73
    %122 = vset.pattern.permute.xlu0 0
    %123 = vperm.xlu0 %122, %v120
    %v124 = vpop.permute.xlu0 %123
    %v126 = vmul.f32 %v124, %v117
    %v127 = vmul.f32 %v124, %v118
    %v128 = vmul.f32 %v124, %v119
    %132 = vrot.lane.b32.xlu0 %v126, 127
    %v133 = vpop.permute.xlu0 %132
    %134 = vrot.lane.b32.xlu0 %v127, 127
    %v135 = vpop.permute.xlu0 %134
    %136 = vrot.lane.b32.xlu0 %v128, 127
    %v137 = vpop.permute.xlu0 %136
    %vm138 = vcmask 1039360
    %v139 = vsel %vm138, %v133, %v135
    %v140 = vsel %vm138, %v135, %v137
    %v143 = vadd.f32 %v115, %v139
    %v144 = vadd.f32 %v116, %v140
    %vm145 = vcmp.lt.s32.totalorder %v99, 15
    %vm146 = vcmp.lt.s32.totalorder %v100, 15
    %150 = vrot.lane.b32.xlu0 %v117, 126
    %v151 = vpop.permute.xlu0 %150
    %152 = vrot.lane.b32.xlu0 %v118, 126
    %v153 = vpop.permute.xlu0 %152
    %154 = vrot.lane.b32.xlu0 %v119, 126
    %v155 = vpop.permute.xlu0 %154
    %vm156 = vcmask 1031168
    %v157 = vsel %vm156, %v151, %v153
    %v158 = vsel %vm156, %v153, %v155
    %v161 = vsel %vm145, %v157, 0.0
    %v162 = vsel %vm146, %v158, 0.0
    %v163 = vmul.f32 %v111, %v161
    %v164 = vmul.f32 %v111, %v162
    %v165 = vadd.f32 %v143, %v163
    %v166 = vadd.f32 %v144, %v164
    %167 = vrot.lane.b32.xlu0 %v117, 112
    %v168 = vpop.permute.xlu0 %167
    %169 = vrot.lane.b32.xlu0 %v118, 112
    %v170 = vpop.permute.xlu0 %169
    %171 = vrot.lane.b32.xlu0 %v119, 112
    %v172 = vpop.permute.xlu0 %171
    %vm173 = vcmask 916480
    %v174 = vsel %vm173, %v168, %v170
    %v175 = vsel %vm173, %v170, %v172
    %v178 = vsel %vm103, %v174, 0.0
    %v179 = vsel %vm104, %v175, 0.0
    %v180 = vmul.f32 %v124, %v178
    %v181 = vmul.f32 %v124, %v179
    %v182 = vadd.f32 %v165, %v180
    %v183 = vadd.f32 %v166, %v181
    %v184 = vmul.f32 %v66, %v73
    %186 = vset.pattern.permute.xlu0 0
    %187 = vperm.xlu0 %186, %v184
    %v188 = vpop.permute.xlu0 %187
    %v190 = vmul.f32 %v188, %v117
    %v191 = vmul.f32 %v188, %v118
    %v192 = vmul.f32 %v188, %v119
    %196 = vrot.lane.b32.xlu0 %v190, 111
    %v197 = vpop.permute.xlu0 %196
    %198 = vrot.lane.b32.xlu0 %v191, 111
    %v199 = vpop.permute.xlu0 %198
    %200 = vrot.lane.b32.xlu0 %v192, 111
    %v201 = vpop.permute.xlu0 %200
    %vm202 = vcmask 908288
    %v203 = vsel %vm202, %v197, %v199
    %v204 = vsel %vm202, %v199, %v201
    %v207 = vadd.f32 %v182, %v203
    %v208 = vadd.f32 %v183, %v204
    %209 = vrot.lane.b32.xlu0 %v117, 110
    %v210 = vpop.permute.xlu0 %209
    %211 = vrot.lane.b32.xlu0 %v118, 110
    %v212 = vpop.permute.xlu0 %211
    %213 = vrot.lane.b32.xlu0 %v119, 110
    %v214 = vpop.permute.xlu0 %213
    %vm215 = vcmask 900096
    %v216 = vsel %vm215, %v210, %v212
    %v217 = vsel %vm215, %v212, %v214
    %v220 = vsel %vm145, %v216, 0.0
    %v221 = vsel %vm146, %v217, 0.0
    %v222 = vmul.f32 %v124, %v220
    %v223 = vmul.f32 %v124, %v221
    %v224 = vadd.f32 %v207, %v222
    %v225 = vadd.f32 %v208, %v223
    %226 = vrot.lane.b32.xlu0 %v117, 96
    %v227 = vpop.permute.xlu0 %226
    %228 = vrot.lane.b32.xlu0 %v118, 96
    %v229 = vpop.permute.xlu0 %228
    %230 = vrot.lane.b32.xlu0 %v119, 96
    %v231 = vpop.permute.xlu0 %230
    %vm232 = vcmask 785408
    %v233 = vsel %vm232, %v227, %v229
    %v234 = vsel %vm232, %v229, %v231
    %v237 = vsel %vm103, %v233, 0.0
    %v238 = vsel %vm104, %v234, 0.0
    %v239 = vmul.f32 %v111, %v237
    %v240 = vmul.f32 %v111, %v238
    %v241 = vadd.f32 %v224, %v239
    %v242 = vadd.f32 %v225, %v240
    %243 = vrot.lane.b32.xlu0 %v126, 95
    %v244 = vpop.permute.xlu0 %243
    %245 = vrot.lane.b32.xlu0 %v127, 95
    %v246 = vpop.permute.xlu0 %245
    %247 = vrot.lane.b32.xlu0 %v128, 95
    %v248 = vpop.permute.xlu0 %247
    %vm249 = vcmask 777216
    %v250 = vsel %vm249, %v244, %v246
    %v251 = vsel %vm249, %v246, %v248
    %v254 = vadd.f32 %v241, %v250
    %v255 = vadd.f32 %v242, %v251
    %256 = vrot.lane.b32.xlu0 %v117, 94
    %v257 = vpop.permute.xlu0 %256
    %258 = vrot.lane.b32.xlu0 %v118, 94
    %v259 = vpop.permute.xlu0 %258
    %260 = vrot.lane.b32.xlu0 %v119, 94
    %v261 = vpop.permute.xlu0 %260
    %vm262 = vcmask 769024
    %v263 = vsel %vm262, %v257, %v259
    %v264 = vsel %vm262, %v259, %v261
    %v267 = vsel %vm145, %v263, 0.0
    %v268 = vsel %vm146, %v264, 0.0
    %v269 = vmul.f32 %v111, %v267
    %v270 = vmul.f32 %v111, %v268
    %v271 = vadd.f32 %v254, %v269
    %v272 = vadd.f32 %v255, %v270
    %v273 = vadd.f32 %v271, 1.1920929e-07
    %v274 = vadd.f32 %v272, 1.1920929e-07
    %v275 = vlog2.pop %v273
    %v276 = vmul.f32 %v275, 0.6931472
    %v277 = vlog2.pop %v274
    %v278 = vmul.f32 %v277, 0.6931472
    %279 = vst [vmem:[#allocation6] sm:$0xff] %v276
    %280 = vst [vmem:[#allocation6 + $0x8] sm:$0xff] %v278
    // Predicated region
    $region14: #{tpu_custom_call.1} parent=1 // pred_check
      _
    $region15: #{tpu_custom_call.1} parent=1 // pred_check_branch
      %282 = sbr.rel (0) target = $region17
    $region16: #{tpu_custom_call.1} parent=1 // pred_region
      %s284 = ssub.s32 256, 256
      %285 = vsyncadd [#allocation5], %s284
      %s287 = sshll.u32 [#allocation6], 4
      %s288 = int_to_ptr.vmem [resolvable:$true] %s287
      %290 = dma.vmem_to_hbm [thread:$0]  %s288, 256, %s2, [#allocation5]
    $region17: #{tpu_custom_call.1} parent=1 // pred_fallthru
      _
    // Predicated region
    $region18: #{tpu_custom_call.1} parent=1 // pred_check
      _
    $region19: #{tpu_custom_call.1} parent=1 // pred_check_branch
      %292 = sbr.rel (0) target = $region21
    $region20: #{tpu_custom_call.1} parent=1 // pred_region
      %293 = dma.done [#allocation5], 256
    $region21: #{tpu_custom_call.1} parent=1 // pred_fallthru
      _
    %294 = vsyncpa [#allocation4], 1
    %295 = vsyncpa [#allocation5], 1

</llo_original>
